<compile_context>
chip_gen: v6e
topology: v6e:2x2x1
jax: 0.10.0
libtpu: 0.0.40
codegen_flags: <defaults>
</compile_context>

<pallas_src>
import jax
import jax.numpy as jnp
from jax.experimental import pallas as pl
from jax.experimental.pallas import tpu as pltpu


def policy_kernel(x_ref, w1_ref, b1_ref, wd_ref, bd_ref, o_ref):
    x = x_ref[...]            # (TB, 4)
    w1 = w1_ref[...]          # (4, H)

    # fc1 as K=4 unrolled VPU broadcast-FMAs (avoid MXU push/pop for a tiny K).
    h = x[:, 0:1] * w1[0:1, :]
    h = h + x[:, 1:2] * w1[1:2, :]
    h = h + x[:, 2:3] * w1[2:3, :]
    h = h + x[:, 3:4] * w1[3:4, :]
    h = h + b1_ref[...]       # (1, H) broadcast
    h = jnp.maximum(h, 0.0)   # ReLU

    # fc2 + 2-class softmax == sigmoid of the logit difference.
    # d = h @ (w2[:,1] - w2[:,0]) + (b2[1] - b2[0])   -> (TB, 1)
    d = jnp.sum(h * wd_ref[...], axis=1, keepdims=True) + bd_ref[...]
    p1 = 1.0 / (1.0 + jnp.exp(-d))                    # sigmoid, EUP exp

    # out[:, 0] = 1 - p1, out[:, 1] = p1  (single dense store, no concat).
    col = jax.lax.broadcasted_iota(jnp.int32, o_ref.shape, 1)
    o_ref[...] = jnp.where(col == 0, 1.0 - p1, p1).astype(o_ref.dtype)


def policy_forward(x, w1, b1, w2, b2, *, batch_tile=512):
    """x: (B,4) f32; w1: (4,H); b1: (1,H); w2: (H,2); b2: (1,2) -> (B,2) softmax probs."""
    B = x.shape[0]
    H = w1.shape[1]

    # Precompute the fc2 weight/bias differences for the sigmoid identity.
    wd = (w2[:, 1] - w2[:, 0]).reshape(1, H).astype(jnp.float32)
    bd = (b2[0, 1] - b2[0, 0]).reshape(1, 1).astype(jnp.float32)

    # Batch tiling: single full-batch tile for small B, otherwise 512-row tiles
    # (multiple of 8 sublanes) with zero-padding on the batch axis.
    if B <= batch_tile:
        tb = B
        bp = B
    else:
        tb = batch_tile
        bp = pl.cdiv(B, tb) * tb
    if bp != B:
        x = jnp.pad(x, ((0, bp - B), (0, 0)))
    grid = (bp // tb,)

    out = pl.pallas_call(
        policy_kernel,
        out_shape=jax.ShapeDtypeStruct((bp, 2), jnp.float32),
        grid=grid,
        in_specs=[
            pl.BlockSpec((tb, 4), lambda i: (i, 0)),   # x: streamed per batch tile
            pl.BlockSpec((4, H), lambda i: (0, 0)),    # w1: resident across grid
            pl.BlockSpec((1, H), lambda i: (0, 0)),    # b1: resident
            pl.BlockSpec((1, H), lambda i: (0, 0)),    # w2[:,1]-w2[:,0]: resident
            pl.BlockSpec((1, 1), lambda i: (0, 0)),    # b2[1]-b2[0]: resident
        ],
        out_specs=pl.BlockSpec((tb, 2), lambda i: (i, 0)),
        compiler_params=pltpu.CompilerParams(
            dimension_semantics=("parallel",)),        # v7x: shard batch across TCs
    )(x, w1, b1, wd, bd)
    return out[:B]


def init_params(key):
    # Deterministic init mirroring nn.Linear's default U(-1/sqrt(fan_in), 1/sqrt(fan_in)).
    k1, k2, k3, k4 = jax.random.split(key, 4)
    bound1 = 1.0 / jnp.sqrt(4.0)
    bound2 = 1.0 / jnp.sqrt(128.0)
    # stored as (in, out) so the forward computes x @ W
    w1 = jax.random.uniform(k1, (4, 128), jnp.float32, -bound1, bound1)
    b1 = jax.random.uniform(k2, (1, 128), jnp.float32, -bound1, bound1)
    w2 = jax.random.uniform(k3, (128, 2), jnp.float32, -bound2, bound2)
    b2 = jax.random.uniform(k4, (1, 2), jnp.float32, -bound2, bound2)
    return w1, b1, w2, b2


if __name__ == "__main__":
    key = jax.random.PRNGKey(0)
    kx, kp = jax.random.split(key)
    B = 2
    x = jax.random.normal(kx, (B, 4), jnp.float32)  # CartPole observation: 4 features
    w1, b1, w2, b2 = init_params(kp)

    out = policy_forward(x, w1, b1, w2, b2)
    out = jax.block_until_ready(out)

    # Reference check in plain JAX (matches the PyTorch module's forward).
    h_ref = jnp.maximum(x @ w1 + b1, 0.0)
    logits_ref = h_ref @ w2 + b2
    ref = jax.nn.softmax(logits_ref, axis=1)
    assert out.shape == (B, 2)
    assert jnp.allclose(out, ref, atol=1e-5), "mismatch vs reference"
    assert jnp.allclose(jnp.sum(out, axis=1), 1.0, atol=1e-5)

    print("KERNEL_OK")
</pallas_src>

<mosaic_0001>
module attributes {stable_mosaic.version = 11 : i64} {
  func.func @policy_kernel(%arg0: i32, %arg1: memref<2x4xf32, #tpu.memory_space<vmem>>, %arg2: memref<4x128xf32, #tpu.memory_space<vmem>>, %arg3: memref<1x128xf32, #tpu.memory_space<vmem>>, %arg4: memref<1x128xf32, #tpu.memory_space<vmem>>, %arg5: memref<1x1xf32, #tpu.memory_space<vmem>>, %arg6: memref<2x2xf32, #tpu.memory_space<vmem>>) attributes {dimension_semantics = [#tpu.dimension_semantics<parallel>], iteration_bounds = array<i64: 1>, scalar_prefetch = 0 : i64, scratch_operands = 0 : i64, tpu.core_type = #tpu.core_type<tc>, window_params = [{transform_indices = @transform_0, window_bounds = array<i64: 2, 4>}, {pipeline_mode = #tpu.pipeline_mode<synchronous>, transform_indices = @transform_1, window_bounds = array<i64: 4, 128>}, {pipeline_mode = #tpu.pipeline_mode<synchronous>, transform_indices = @transform_2, window_bounds = array<i64: 1, 128>}, {pipeline_mode = #tpu.pipeline_mode<synchronous>, transform_indices = @transform_3, window_bounds = array<i64: 1, 128>}, {pipeline_mode = #tpu.pipeline_mode<synchronous>, transform_indices = @transform_4, window_bounds = array<i64: 1, 1>}, {transform_indices = @transform_5, window_bounds = array<i64: 2, 2>}]} {
    %c0 = arith.constant 0 : index
    %c0_0 = arith.constant 0 : index
    %0 = vector.load %arg1[%c0, %c0_0] : memref<2x4xf32, #tpu.memory_space<vmem>>, vector<2x4xf32>
    %c0_1 = arith.constant 0 : index
    %c0_2 = arith.constant 0 : index
    %1 = vector.load %arg2[%c0_1, %c0_2] : memref<4x128xf32, #tpu.memory_space<vmem>>, vector<4x128xf32>
    %2 = vector.extract_strided_slice %0 {offsets = [0, 0], sizes = [2, 1], strides = [1, 1]} : vector<2x4xf32> to vector<2x1xf32>
    %3 = vector.extract_strided_slice %1 {offsets = [0, 0], sizes = [1, 128], strides = [1, 1]} : vector<4x128xf32> to vector<1x128xf32>
    %4 = vector.broadcast %2 : vector<2x1xf32> to vector<2x128xf32>
    %5 = vector.broadcast %3 : vector<1x128xf32> to vector<2x128xf32>
    %6 = arith.mulf %4, %5 : vector<2x128xf32>
    %7 = vector.extract_strided_slice %0 {offsets = [0, 1], sizes = [2, 1], strides = [1, 1]} : vector<2x4xf32> to vector<2x1xf32>
    %8 = vector.extract_strided_slice %1 {offsets = [1, 0], sizes = [1, 128], strides = [1, 1]} : vector<4x128xf32> to vector<1x128xf32>
    %9 = vector.broadcast %7 : vector<2x1xf32> to vector<2x128xf32>
    %10 = vector.broadcast %8 : vector<1x128xf32> to vector<2x128xf32>
    %11 = arith.mulf %9, %10 : vector<2x128xf32>
    %12 = arith.addf %6, %11 : vector<2x128xf32>
    %13 = vector.extract_strided_slice %0 {offsets = [0, 2], sizes = [2, 1], strides = [1, 1]} : vector<2x4xf32> to vector<2x1xf32>
    %14 = vector.extract_strided_slice %1 {offsets = [2, 0], sizes = [1, 128], strides = [1, 1]} : vector<4x128xf32> to vector<1x128xf32>
    %15 = vector.broadcast %13 : vector<2x1xf32> to vector<2x128xf32>
    %16 = vector.broadcast %14 : vector<1x128xf32> to vector<2x128xf32>
    %17 = arith.mulf %15, %16 : vector<2x128xf32>
    %18 = arith.addf %12, %17 : vector<2x128xf32>
    %19 = vector.extract_strided_slice %0 {offsets = [0, 3], sizes = [2, 1], strides = [1, 1]} : vector<2x4xf32> to vector<2x1xf32>
    %20 = vector.extract_strided_slice %1 {offsets = [3, 0], sizes = [1, 128], strides = [1, 1]} : vector<4x128xf32> to vector<1x128xf32>
    %21 = vector.broadcast %19 : vector<2x1xf32> to vector<2x128xf32>
    %22 = vector.broadcast %20 : vector<1x128xf32> to vector<2x128xf32>
    %23 = arith.mulf %21, %22 : vector<2x128xf32>
    %24 = arith.addf %18, %23 : vector<2x128xf32>
    %c0_3 = arith.constant 0 : index
    %c0_4 = arith.constant 0 : index
    %25 = vector.load %arg3[%c0_3, %c0_4] : memref<1x128xf32, #tpu.memory_space<vmem>>, vector<1x128xf32>
    %26 = vector.broadcast %25 : vector<1x128xf32> to vector<2x128xf32>
    %27 = arith.addf %24, %26 : vector<2x128xf32>
    %cst = arith.constant 0.000000e+00 : f32
    %28 = vector.broadcast %cst : f32 to vector<2x128xf32>
    %29 = arith.maximumf %27, %28 : vector<2x128xf32>
    %c0_5 = arith.constant 0 : index
    %c0_6 = arith.constant 0 : index
    %30 = vector.load %arg4[%c0_5, %c0_6] : memref<1x128xf32, #tpu.memory_space<vmem>>, vector<1x128xf32>
    %31 = vector.broadcast %30 : vector<1x128xf32> to vector<2x128xf32>
    %32 = arith.mulf %29, %31 : vector<2x128xf32>
    %cst_7 = arith.constant dense<0.000000e+00> : vector<2xf32>
    %33 = vector.multi_reduction <add>, %32, %cst_7 [1] : vector<2x128xf32> to vector<2xf32>
    %34 = vector.shape_cast %33 : vector<2xf32> to vector<2x1xf32>
    %c0_8 = arith.constant 0 : index
    %c0_9 = arith.constant 0 : index
    %35 = vector.load %arg5[%c0_8, %c0_9] : memref<1x1xf32, #tpu.memory_space<vmem>>, vector<1x1xf32>
    %36 = vector.broadcast %35 : vector<1x1xf32> to vector<2x1xf32>
    %37 = arith.addf %34, %36 : vector<2x1xf32>
    %cst_10 = arith.constant 0.000000e+00 : f32
    %38 = vector.broadcast %cst_10 : f32 to vector<2x1xf32>
    %39 = arith.subf %38, %37 : vector<2x1xf32>
    %40 = math.exp %39 : vector<2x1xf32>
    %cst_11 = arith.constant 1.000000e+00 : f32
    %41 = vector.broadcast %cst_11 : f32 to vector<2x1xf32>
    %42 = arith.addf %41, %40 : vector<2x1xf32>
    %cst_12 = arith.constant 1.000000e+00 : f32
    %43 = vector.broadcast %cst_12 : f32 to vector<2x1xf32>
    %44 = arith.divf %43, %42 : vector<2x1xf32>
    %45 = tpu.iota {dimensions = array<i32: 1>} : vector<2x2xi32>
    %c0_i32 = arith.constant 0 : i32
    %46 = vector.broadcast %c0_i32 : i32 to vector<2x2xi32>
    %47 = arith.cmpi eq, %45, %46 : vector<2x2xi32>
    %cst_13 = arith.constant 1.000000e+00 : f32
    %48 = vector.broadcast %cst_13 : f32 to vector<2x1xf32>
    %49 = arith.subf %48, %44 : vector<2x1xf32>
    %50 = vector.shape_cast %49 : vector<2x1xf32> to vector<2x1xf32>
    %51 = vector.broadcast %50 : vector<2x1xf32> to vector<2x2xf32>
    %52 = vector.shape_cast %44 : vector<2x1xf32> to vector<2x1xf32>
    %53 = vector.broadcast %52 : vector<2x1xf32> to vector<2x2xf32>
    %54 = arith.select %47, %51, %53 : vector<2x2xi1>, vector<2x2xf32>
    %c0_14 = arith.constant 0 : index
    %c0_15 = arith.constant 0 : index
    %55 = vector.load %arg6[%c0_14, %c0_15] : memref<2x2xf32, #tpu.memory_space<vmem>>, vector<2x2xf32>
    tpu.vector_store %arg6[%c0_14, %c0_15], %54 {strides = array<i32>} : memref<2x2xf32, #tpu.memory_space<vmem>>, vector<2x2xf32>,
    return
  }
  func.func @transform_0(%arg0: i32) -> (i32, i32) {
    %c0_i32 = arith.constant 0 : i32
    %c0_i32_0 = arith.constant 0 : i32
    return %arg0, %c0_i32 : i32, i32
  }
  func.func @transform_1(%arg0: i32) -> (i32, i32) {
    %c0_i32 = arith.constant 0 : i32
    %c0_i32_0 = arith.constant 0 : i32
    %c0_i32_1 = arith.constant 0 : i32
    return %c0_i32, %c0_i32_0 : i32, i32
  }
  func.func @transform_2(%arg0: i32) -> (i32, i32) {
    %c0_i32 = arith.constant 0 : i32
    %c0_i32_0 = arith.constant 0 : i32
    %c0_i32_1 = arith.constant 0 : i32
    return %c0_i32, %c0_i32_0 : i32, i32
  }
  func.func @transform_3(%arg0: i32) -> (i32, i32) {
    %c0_i32 = arith.constant 0 : i32
    %c0_i32_0 = arith.constant 0 : i32
    %c0_i32_1 = arith.constant 0 : i32
    return %c0_i32, %c0_i32_0 : i32, i32
  }
  func.func @transform_4(%arg0: i32) -> (i32, i32) {
    %c0_i32 = arith.constant 0 : i32
    %c0_i32_0 = arith.constant 0 : i32
    %c0_i32_1 = arith.constant 0 : i32
    return %c0_i32, %c0_i32_0 : i32, i32
  }
  func.func @transform_5(%arg0: i32) -> (i32, i32) {
    %c0_i32 = arith.constant 0 : i32
    %c0_i32_0 = arith.constant 0 : i32
    return %arg0, %c0_i32 : i32, i32
  }
}

</mosaic_0001>

<llo_original>
// kernel: tpu_custom_call.1
$region0: #{tpu_custom_call.1}
  #allocation0 [shape = 'u32[]', space=smem, size = 0x4, offset = 0x4, fixed_abs, tag = 'smem constant byte address 0x4 - core index']
  #allocation1 [shape = 'u32[144,128]{1,0:T(1,128)}', space=vmem, size = 0x12000, scoped, tag = 'internal scratch']
  #allocation2 [shape = 'f32[1,1]{1,0:T(1,128)S(1)}', space=vmem, size = 0x200, scoped, tag = 'scoped memory for tpu_custom_call.1']
  %s0 = inlined_call_operand.vmem [shape: f32[2,4], index: 0, kind: input, shape index: {}]
  %s1 = inlined_call_operand.hbm [shape: f32[4,128], index: 1, kind: input, shape index: {}]
  %s2 = inlined_call_operand.vmem [shape: f32[1,128], index: 2, kind: input, shape index: {}]
  %s3 = inlined_call_operand.vmem [shape: f32[1,128], index: 3, kind: input, shape index: {}]
  %s4 = inlined_call_operand.<no memory space> [shape: f32[1,1], index: 4, kind: input, shape index: {}]
  %s5 = inlined_call_operand.hbm [shape: f32[2,2], index: 5, kind: output, shape index: {}]
  %s6 = sld [smem:[#allocation0]]
  $region34: #{tpu_custom_call.1} parent=0
    _
  %s8 = ssub.s32 1, %s6
  %s9 = scalar_select 0, %s8, %s6
  %v10 = vstv %s4
  %11 = vst [vmem:[#allocation2] sm:$0x1] %v10
  $region1: #{tpu_custom_call.1} parent=0
    #allocation3 [shape = 'u8[2048]{0}', space=vmem, size = 0x800, scoped, tag = 'input window, operand 1, single buffered']
    #allocation4 [shape = 's32[1]{0}', space=sflag, size = 0x4, scoped, tag = 'scoped memory for tpu_custom_call.1']
    #allocation5 [shape = 's32[1]{0}', space=sflag, size = 0x4, scoped, tag = 'scoped memory for tpu_custom_call.1']
    #allocation6 [shape = 'u8[1024]{0}', space=vmem, size = 0x400, scoped, tag = 'output window, operand 0, single buffered']
    %12 = vsyncpa [#allocation4], 0
    %13 = vsyncpa [#allocation5], 0
    // Predicated region
    $region2: #{tpu_custom_call.1} parent=1 // pred_check
      _
    $region3: #{tpu_custom_call.1} parent=1 // pred_check_branch
      %15 = sbr.rel (0) target = $region5
    $region4: #{tpu_custom_call.1} parent=1 // pred_region
      _
    $region5: #{tpu_custom_call.1} parent=1 // pred_fallthru
      _
    // Predicated region
    $region6: #{tpu_custom_call.1} parent=1 // pred_check
      _
    $region7: #{tpu_custom_call.1} parent=1 // pred_check_branch
      %17 = sbr.rel (0) target = $region9
    $region8: #{tpu_custom_call.1} parent=1 // pred_region
      %s19 = ssub.s32 64, 64
      %20 = vsyncadd [#allocation4], %s19
      %s22 = sshll.u32 [#allocation3], 4
      %s23 = int_to_ptr.vmem [resolvable:$true] %s22
      %25 = dma.hbm_to_vmem [thread:$0]  %s1, 64, %s23, [#allocation4]
    $region9: #{tpu_custom_call.1} parent=1 // pred_fallthru
      _
    // Predicated region
    $region10: #{tpu_custom_call.1} parent=1 // pred_check
      _
    $region11: #{tpu_custom_call.1} parent=1 // pred_check_branch
      %27 = sbr.rel (0) target = $region13
    $region12: #{tpu_custom_call.1} parent=1 // pred_region
      _
    $region13: #{tpu_custom_call.1} parent=1 // pred_fallthru
      _
    // Predicated region
    $region14: #{tpu_custom_call.1} parent=1 // pred_check
      _
    $region15: #{tpu_custom_call.1} parent=1 // pred_check_branch
      %29 = sbr.rel (0) target = $region17
    $region16: #{tpu_custom_call.1} parent=1 // pred_region
      _
    $region17: #{tpu_custom_call.1} parent=1 // pred_fallthru
      _
    // Predicated region
    $region18: #{tpu_custom_call.1} parent=1 // pred_check
      _
    $region19: #{tpu_custom_call.1} parent=1 // pred_check_branch
      %31 = sbr.rel (0) target = $region21
    $region20: #{tpu_custom_call.1} parent=1 // pred_region
      _
    $region21: #{tpu_custom_call.1} parent=1 // pred_fallthru
      _
    // Predicated region
    $region22: #{tpu_custom_call.1} parent=1 // pred_check
      _
    $region23: #{tpu_custom_call.1} parent=1 // pred_check_branch
      %33 = sbr.rel (0) target = $region25
    $region24: #{tpu_custom_call.1} parent=1 // pred_region
      %34 = dma.done [#allocation4], 64
    $region25: #{tpu_custom_call.1} parent=1 // pred_fallthru
      _
    %v35 = vld [vmem:[%s0] sm:$0x3]
    %v36 = vld [vmem:[#allocation3] sm:$0xf]
    %38 = vset.pattern.permute.xlu0 0
    %39 = vperm.xlu0 %38, %v35
    %v40 = vpop.permute.xlu0 %39
    %v42 = vlaneseq
    %v43 = vshrl.u32 %v42, 7
    %v44 = vsub.s32 0, %v43
    %v45 = vrot.slane %v36, %v44
    %v46 = vmul.f32 %v40, %v45
    %47 = vset.pattern.permute.xlu0 1
    %48 = vperm.xlu0 %47, %v35
    %v49 = vpop.permute.xlu0 %48
    %v51 = vlaneseq
    %v52 = vshrl.u32 %v51, 7
    %v53 = vsub.s32 1, %v52
    %v54 = vrot.slane %v36, %v53
    %v55 = vmul.f32 %v49, %v54
    %v56 = vadd.f32 %v46, %v55
    %57 = vset.pattern.permute.xlu0 2
    %58 = vperm.xlu0 %57, %v35
    %v59 = vpop.permute.xlu0 %58
    %v61 = vlaneseq
    %v62 = vshrl.u32 %v61, 7
    %v63 = vsub.s32 2, %v62
    %v64 = vrot.slane %v36, %v63
    %v65 = vmul.f32 %v59, %v64
    %v66 = vadd.f32 %v56, %v65
    %67 = vset.pattern.permute.xlu0 3
    %68 = vperm.xlu0 %67, %v35
    %v69 = vpop.permute.xlu0 %68
    %v71 = vlaneseq
    %v72 = vshrl.u32 %v71, 7
    %v73 = vsub.s32 3, %v72
    %v74 = vrot.slane %v36, %v73
    %v75 = vmul.f32 %v69, %v74
    %v76 = vadd.f32 %v66, %v75
    %v77 = vld [vmem:[%s2] sm:$0x1]
    %v79 = vlaneseq
    %v80 = vshrl.u32 %v79, 7
    %v81 = vsub.s32 0, %v80
    %v82 = vrot.slane %v77, %v81
    %v84 = vadd.f32 %v76, %v82
    %v85 = vmax.f32 %v84, 0.0
    %v86 = vld [vmem:[%s3] sm:$0x1]
    %v88 = vlaneseq
    %v89 = vshrl.u32 %v88, 7
    %v90 = vsub.s32 0, %v89
    %v91 = vrot.slane %v86, %v90
    %v93 = vmul.f32 %v85, %v91
    %vm94 = vcmask 1041408
    %v95 = vsel %vm94, %v93, 0.0
    %96 = vadd.xlane.f32.xlu0 %v95
    %v97 = vpop.xlane.xlu0 %96
    %v98 = vld [vmem:[#allocation2] sm:$0x1]
    %v100 = vlaneseq
    %v101 = vshrl.u32 %v100, 7
    %v102 = vsub.s32 0, %v101
    %v103 = vrot.slane %v98, %v102
    %v105 = vadd.f32 %v97, %v103
    %v106 = vsub.f32 0.0, %v105
    %v107 = vmul.f32 %v106, 1.442695
    %v108 = vpow.pop %v107
    %v109 = vadd.f32 %v108, 1.0
    %v110 = vrcp.pop %v109
    %v111 = vmul.f32 1.0, %v110
    %v112 = vlaneseq
    %v113 = vand.u32 %v112, 127
    %vm114 = vcmp.eq.s32.totalorder %v113, 0
    %v115 = vsub.f32 1.0, %v111
    %117 = vset.pattern.permute.xlu0 0
    %118 = vperm.xlu0 %117, %v115
    %v119 = vpop.permute.xlu0 %118
    %122 = vset.pattern.permute.xlu0 0
    %123 = vperm.xlu0 %122, %v111
    %v124 = vpop.permute.xlu0 %123
    %v126 = vsel %vm114, %v119, %v124
    %vm127 = vcmask 9216
    %128 = vst.msk [vmem:[#allocation6] sm:$0x3] %vm127, %v126
    // Predicated region
    $region26: #{tpu_custom_call.1} parent=1 // pred_check
      _
    $region27: #{tpu_custom_call.1} parent=1 // pred_check_branch
      %130 = sbr.rel (0) target = $region29
    $region28: #{tpu_custom_call.1} parent=1 // pred_region
      %s132 = ssub.s32 32, 32
      %133 = vsyncadd [#allocation5], %s132
      %s135 = sshll.u32 [#allocation6], 4
      %s136 = int_to_ptr.vmem [resolvable:$true] %s135
      %138 = dma.vmem_to_hbm [thread:$0]  %s136, 32, %s5, [#allocation5]
    $region29: #{tpu_custom_call.1} parent=1 // pred_fallthru
      _
    // Predicated region
    $region30: #{tpu_custom_call.1} parent=1 // pred_check
      _
    $region31: #{tpu_custom_call.1} parent=1 // pred_check_branch
      %140 = sbr.rel (0) target = $region33
    $region32: #{tpu_custom_call.1} parent=1 // pred_region
      %141 = dma.done [#allocation5], 32
    $region33: #{tpu_custom_call.1} parent=1 // pred_fallthru
      _
    %142 = vsyncpa [#allocation4], 1
    %143 = vsyncpa [#allocation5], 1

</llo_original>
